<compile_context>
chip_gen: v6e
topology: v6e:2x2x1
jax: 0.10.0
libtpu: 0.0.40
codegen_flags: <defaults>
</compile_context>

<pallas_src>
import jax
import jax.numpy as jnp
from jax import lax
from jax.experimental import pallas as pl
from jax.experimental.pallas import tpu as pltpu


def _round_up(n: int, m: int) -> int:
    return ((n + m - 1) // m) * m


def _tpu_vmem_capacity_bytes() -> int:
    """Physical VMEM per TensorCore; conservative default if the query fails."""
    try:
        return int(pltpu.get_tpu_info().vmem_capacity_bytes)
    except Exception:
        return 64 * 1024 * 1024          # v7x per-TensorCore VMEM (smallest)


def _choose_tile_b(batch: int, max_tile: int) -> int:
    """Batch-tile rows: as large as the chip affords, but >= 2 grid steps when
    the batch allows it (v7x megacore), and a snug tile for tiny batches."""
    tb = max_tile
    while tb > 256 and pl.cdiv(batch, tb) < 2:
        tb //= 2
    if batch <= tb:                       # single tile: multiple of 8 sublanes
        tb = max(_round_up(batch, 8), 8)
    return tb


def _make_mlp_kernel(num_hidden: int, final_on_mxu: bool):
    """Fused kernel: `num_hidden` [Linear+ReLU] layers + final Linear(prev,1).

    Kernel args (in order):
        x_ref:               (TILE_B, in_dim)  natural layout, f32
        w_i, b_i (hidden):   (out_i, in_i) bf16, (out_i, 1) f32
        w_last, b_last:      (1, prev) bf16   [MXU path]  or
                             (prev, 1) f32    [VPU path],  (1, 1) f32
        o_ref:               (1, TILE_B)      lane-dense output row, f32
    """

    def kernel(x_ref, *refs):
        o_ref = refs[-1]
        p = refs[:-1]                     # w0, b0, ..., w_last, b_last

        xb = x_ref[...].astype(jnp.bfloat16)          # (TILE_B, in_dim)

        if num_hidden == 0:
            out = lax.dot_general(p[0][...], xb, (((1,), (1,)), ((), ())),
                                  preferred_element_type=jnp.float32)
            o_ref[...] = out + p[1][...]
            return

        # Layer 0: contract on x's last dim -> lane-dense (out0, TILE_B).
        h = lax.dot_general(p[0][...], xb, (((1,), (1,)), ((), ())),
                            preferred_element_type=jnp.float32)
        h = jnp.maximum(h + p[1][...], 0.0)

        # Remaining hidden layers: (out_i, in_i) @ (in_i, TILE_B) on the MXU.
        for i in range(1, num_hidden):
            h = jnp.dot(p[2 * i][...], h.astype(jnp.bfloat16),
                        preferred_element_type=jnp.float32)
            h = jnp.maximum(h + p[2 * i + 1][...], 0.0)

        w_last, b_last = p[-2][...], p[-1][...]
        if final_on_mxu:
            # Wide prev: (1, prev) @ (prev, TILE_B) on the MXU.
            out = jnp.dot(w_last, h.astype(jnp.bfloat16),
                          preferred_element_type=jnp.float32)
        else:
            # Small prev: VPU broadcast-multiply + sublane reduction.
            out = jnp.sum(h * w_last, axis=0, keepdims=True)
        o_ref[...] = out + b_last

    return kernel


def mlp_forward(x, params):
    """Fused MLP forward pass.

    x:      (B, input_dim) float32
    params: list of (w, b) in PyTorch layout: w (out, in), b (out,)
    returns (B,) float32   (matches PyTorch `model(x).squeeze(1)`)
    """
    batch, in_dim = x.shape
    num_hidden = len(params) - 1
    widths = [in_dim] + [w.shape[0] for w, _ in params]      # ends with 1

    vmem_cap = _tpu_vmem_capacity_bytes()
    max_tile = 1024 if vmem_cap >= 100 * 1024 * 1024 else 512   # v5e/v6e vs v7x
    tile_b = _choose_tile_b(batch, max_tile)
    num_tiles = pl.cdiv(batch, tile_b)
    b_model = num_tiles * tile_b          # lanes actually written (>= batch)

    prev = widths[-2]
    final_on_mxu = (num_hidden == 0) or (prev >= 512)

    # One-time wrapper-side param prep (bf16 weights, f32 column biases).
    # Note: hidden widths that are multiples of 128/256 map best onto the MXU;
    # we keep the dims as given rather than zero-padding them wrapper-side.
    weight_args = []
    for li, (w, b) in enumerate(params):
        if li < num_hidden:
            wk = w.astype(jnp.bfloat16)                       # (out_i, in_i)
            bk = b.reshape(-1, 1).astype(jnp.float32)         # (out_i, 1)
        elif final_on_mxu:
            wk = w.astype(jnp.bfloat16)                       # (1, prev)
            bk = b.reshape(1, 1).astype(jnp.float32)
        else:
            wk = w.T.astype(jnp.float32)                      # (prev, 1)
            bk = b.reshape(1, 1).astype(jnp.float32)
        weight_args += [wk, bk]
    flat_args = [x] + weight_args

    # TODO(synk): if the total weight footprint exceeds the VMEM budget
    # (multi-MB layers, esp. on v7x's 64 MiB), tile the widest layer's output
    # dim on a second grid axis / stream weight slabs with pltpu.emit_pipeline
    # instead of keeping every layer VMEM-resident.

    wbytes = sum(int(a.size) * a.dtype.itemsize for a in weight_args)

    # Footprint-derived VMEM budget (conservatively assumes double-buffered
    # weights), capped by the chip's physical VMEM.
    stream_bytes = 2 * (tile_b * in_dim * 4) + 2 * (tile_b * 4)
    act_bytes = 3 * max(widths) * tile_b * 4
    budget = int(1.5 * (2 * wbytes + stream_bytes + act_bytes)) + (8 << 20)
    vmem_limit = max(min(budget, min(int(vmem_cap * 0.75), 100 << 20)),
                     32 << 20)

    flops = 2 * b_model * sum(widths[i] * widths[i + 1]
                              for i in range(len(widths) - 1))
    bytes_accessed = int(x.size) * x.dtype.itemsize + wbytes + b_model * 4

    const2 = lambda i: (0, 0)             # resident params: same block always

    def build_call(weight_pipeline_mode):
        in_specs = [pl.BlockSpec((tile_b, in_dim), lambda i: (i, 0))]
        for a in weight_args:
            if weight_pipeline_mode is None:
                in_specs.append(pl.BlockSpec(a.shape, const2))
            else:
                in_specs.append(pl.BlockSpec(a.shape, const2,
                                             pipeline_mode=weight_pipeline_mode))
        return pl.pallas_call(
            _make_mlp_kernel(num_hidden, final_on_mxu),
            out_shape=jax.ShapeDtypeStruct((1, b_model), jnp.float32),
            grid=(num_tiles,),
            in_specs=in_specs,
            out_specs=pl.BlockSpec((1, tile_b), lambda i: (0, i)),
            compiler_params=pltpu.CompilerParams(
                dimension_semantics=("parallel",),    # megacore sharding (v7x)
                vmem_limit_bytes=vmem_limit),
            cost_estimate=pl.CostEstimate(
                flops=flops, transcendentals=0, bytes_accessed=bytes_accessed),
        )

    # Single-buffer the resident weights only when double-buffering them would
    # waste meaningful VMEM (matters on v7x); tiny models keep the default.
    weight_pipeline_mode = None
    if 2 * wbytes > (4 << 20) and hasattr(pl, "Buffered"):
        weight_pipeline_mode = pl.Buffered(1)

    try:
        out = jax.block_until_ready(
            build_call(weight_pipeline_mode)(*flat_args))
    except Exception:
        if weight_pipeline_mode is None:
            raise
        # This JAX version doesn't accept BlockSpec.pipeline_mode here: fall
        # back to default (double-buffered, still fetched-once) weight blocks.
        out = jax.block_until_ready(build_call(None)(*flat_args))

    return out[0, :batch]


def init_mlp_params(key, input_dim, hidden_layers):
    """Deterministic init mirroring PyTorch nn.Linear defaults:
    weight (out, in), bias (out,) ~ U(-1/sqrt(fan_in), 1/sqrt(fan_in))."""
    dims = [input_dim] + list(hidden_layers) + [1]
    params = []
    for i in range(len(dims) - 1):
        fan_in, fan_out = dims[i], dims[i + 1]
        key, kw, kb = jax.random.split(key, 3)
        bound = float(fan_in) ** -0.5
        w = jax.random.uniform(kw, (fan_out, fan_in), jnp.float32,
                               minval=-bound, maxval=bound)
        b = jax.random.uniform(kb, (fan_out,), jnp.float32,
                               minval=-bound, maxval=bound)
        params.append((w, b))
    return params


def reference_mlp(x, params):
    """Pure-JAX reference of the same forward pass (PyTorch-layout params)."""
    h = x
    for i, (w, b) in enumerate(params):
        h = h @ w.T + b
        if i < len(params) - 1:
            h = jnp.maximum(h, 0.0)
    return jnp.squeeze(h, axis=1)


if __name__ == "__main__":
    key = jax.random.PRNGKey(0)

    batch = 8
    input_dim = 16
    hidden_layers = [32, 16]

    key, kx = jax.random.split(key)
    x = jax.random.normal(kx, (batch, input_dim), jnp.float32)
    params = init_mlp_params(key, input_dim, hidden_layers)

    out = jax.block_until_ready(mlp_forward(x, params))

    # The kernel runs weights/activations through bf16 on the MXU with f32
    # accumulation: compare tightly against a reference using the same
    # bf16-rounded weights, and loosely against the full-f32 reference.
    ref_f32 = reference_mlp(x, params)
    params_rt = [(w.astype(jnp.bfloat16).astype(jnp.float32), b)
                 for w, b in params]
    ref_bf16w = reference_mlp(x, params_rt)

    assert out.shape == (batch,), out.shape
    assert jnp.allclose(out, ref_bf16w, atol=2e-2, rtol=2e-2), (out, ref_bf16w)
    assert jnp.allclose(out, ref_f32, atol=6e-2, rtol=6e-2), (out, ref_f32)

    print("KERNEL_OK")
</pallas_src>

<mosaic_0001>
module attributes {stable_mosaic.version = 11 : i64} {
  func.func @kernel(%arg0: i32, %arg1: memref<8x16xf32, #tpu.memory_space<vmem>>, %arg2: memref<32x16xbf16, #tpu.memory_space<vmem>>, %arg3: memref<32x1xf32, #tpu.memory_space<vmem>>, %arg4: memref<16x32xbf16, #tpu.memory_space<vmem>>, %arg5: memref<16x1xf32, #tpu.memory_space<vmem>>, %arg6: memref<16x1xf32, #tpu.memory_space<vmem>>, %arg7: memref<1x1xf32, #tpu.memory_space<vmem>>, %arg8: memref<1x8xf32, #tpu.memory_space<vmem>>) attributes {dimension_semantics = [#tpu.dimension_semantics<parallel>], iteration_bounds = array<i64: 1>, scalar_prefetch = 0 : i64, scratch_operands = 0 : i64, tpu.core_type = #tpu.core_type<tc>, window_params = [{transform_indices = @transform_0, window_bounds = array<i64: 8, 16>}, {pipeline_mode = #tpu.pipeline_mode<synchronous>, transform_indices = @transform_1, window_bounds = array<i64: 32, 16>}, {pipeline_mode = #tpu.pipeline_mode<synchronous>, transform_indices = @transform_2, window_bounds = array<i64: 32, 1>}, {pipeline_mode = #tpu.pipeline_mode<synchronous>, transform_indices = @transform_3, window_bounds = array<i64: 16, 32>}, {pipeline_mode = #tpu.pipeline_mode<synchronous>, transform_indices = @transform_4, window_bounds = array<i64: 16, 1>}, {pipeline_mode = #tpu.pipeline_mode<synchronous>, transform_indices = @transform_5, window_bounds = array<i64: 16, 1>}, {pipeline_mode = #tpu.pipeline_mode<synchronous>, transform_indices = @transform_6, window_bounds = array<i64: 1, 1>}, {transform_indices = @transform_7, window_bounds = array<i64: 1, 8>}]} {
    %c0 = arith.constant 0 : index
    %c0_0 = arith.constant 0 : index
    %0 = vector.load %arg1[%c0, %c0_0] : memref<8x16xf32, #tpu.memory_space<vmem>>, vector<8x16xf32>
    %1 = arith.truncf %0 : vector<8x16xf32> to vector<8x16xbf16>
    %c0_1 = arith.constant 0 : index
    %c0_2 = arith.constant 0 : index
    %2 = vector.load %arg2[%c0_1, %c0_2] : memref<32x16xbf16, #tpu.memory_space<vmem>>, vector<32x16xbf16>
    %cst = arith.constant dense<0.000000e+00> : vector<32x8xf32>
    %3 = tpu.matmul %2, %1, %cst {dimension_numbers = #tpu.dot_dimension_numbers<[1], [1], [0], [0], [0, 0, 1, 0], [], []>} : vector<32x16xbf16>, vector<8x16xbf16>, vector<32x8xf32> -> vector<32x8xf32>
    %c0_3 = arith.constant 0 : index
    %c0_4 = arith.constant 0 : index
    %4 = vector.load %arg3[%c0_3, %c0_4] : memref<32x1xf32, #tpu.memory_space<vmem>>, vector<32x1xf32>
    %5 = vector.broadcast %4 : vector<32x1xf32> to vector<32x8xf32>
    %6 = arith.addf %3, %5 : vector<32x8xf32>
    %cst_5 = arith.constant 0.000000e+00 : f32
    %7 = vector.broadcast %cst_5 : f32 to vector<32x8xf32>
    %8 = arith.maximumf %6, %7 : vector<32x8xf32>
    %c0_6 = arith.constant 0 : index
    %c0_7 = arith.constant 0 : index
    %9 = vector.load %arg4[%c0_6, %c0_7] : memref<16x32xbf16, #tpu.memory_space<vmem>>, vector<16x32xbf16>
    %10 = arith.truncf %8 : vector<32x8xf32> to vector<32x8xbf16>
    %cst_8 = arith.constant dense<0.000000e+00> : vector<16x8xf32>
    %11 = tpu.matmul %9, %10, %cst_8 {dimension_numbers = #tpu.dot_dimension_numbers<[1], [0], [0], [1], [0, 0, 1, 1], [], []>} : vector<16x32xbf16>, vector<32x8xbf16>, vector<16x8xf32> -> vector<16x8xf32>
    %c0_9 = arith.constant 0 : index
    %c0_10 = arith.constant 0 : index
    %12 = vector.load %arg5[%c0_9, %c0_10] : memref<16x1xf32, #tpu.memory_space<vmem>>, vector<16x1xf32>
    %13 = vector.broadcast %12 : vector<16x1xf32> to vector<16x8xf32>
    %14 = arith.addf %11, %13 : vector<16x8xf32>
    %cst_11 = arith.constant 0.000000e+00 : f32
    %15 = vector.broadcast %cst_11 : f32 to vector<16x8xf32>
    %16 = arith.maximumf %14, %15 : vector<16x8xf32>
    %c0_12 = arith.constant 0 : index
    %c0_13 = arith.constant 0 : index
    %17 = vector.load %arg6[%c0_12, %c0_13] : memref<16x1xf32, #tpu.memory_space<vmem>>, vector<16x1xf32>
    %c0_14 = arith.constant 0 : index
    %c0_15 = arith.constant 0 : index
    %18 = vector.load %arg7[%c0_14, %c0_15] : memref<1x1xf32, #tpu.memory_space<vmem>>, vector<1x1xf32>
    %19 = vector.broadcast %17 : vector<16x1xf32> to vector<16x8xf32>
    %20 = arith.mulf %16, %19 : vector<16x8xf32>
    %cst_16 = arith.constant dense<0.000000e+00> : vector<8xf32>
    %21 = vector.multi_reduction <add>, %20, %cst_16 [0] : vector<16x8xf32> to vector<8xf32>
    %22 = vector.shape_cast %21 : vector<8xf32> to vector<1x8xf32>
    %23 = vector.broadcast %18 : vector<1x1xf32> to vector<1x8xf32>
    %24 = arith.addf %22, %23 : vector<1x8xf32>
    %c0_17 = arith.constant 0 : index
    %c0_18 = arith.constant 0 : index
    %25 = vector.load %arg8[%c0_17, %c0_18] : memref<1x8xf32, #tpu.memory_space<vmem>>, vector<1x8xf32>
    tpu.vector_store %arg8[%c0_17, %c0_18], %24 {strides = array<i32>} : memref<1x8xf32, #tpu.memory_space<vmem>>, vector<1x8xf32>,
    return
  }
  func.func @transform_0(%arg0: i32) -> (i32, i32) {
    %c0_i32 = arith.constant 0 : i32
    %c0_i32_0 = arith.constant 0 : i32
    return %arg0, %c0_i32 : i32, i32
  }
  func.func @transform_1(%arg0: i32) -> (i32, i32) {
    %c0_i32 = arith.constant 0 : i32
    %c0_i32_0 = arith.constant 0 : i32
    %c0_i32_1 = arith.constant 0 : i32
    return %c0_i32, %c0_i32_0 : i32, i32
  }
  func.func @transform_2(%arg0: i32) -> (i32, i32) {
    %c0_i32 = arith.constant 0 : i32
    %c0_i32_0 = arith.constant 0 : i32
    %c0_i32_1 = arith.constant 0 : i32
    return %c0_i32, %c0_i32_0 : i32, i32
  }
  func.func @transform_3(%arg0: i32) -> (i32, i32) {
    %c0_i32 = arith.constant 0 : i32
    %c0_i32_0 = arith.constant 0 : i32
    %c0_i32_1 = arith.constant 0 : i32
    return %c0_i32, %c0_i32_0 : i32, i32
  }
  func.func @transform_4(%arg0: i32) -> (i32, i32) {
    %c0_i32 = arith.constant 0 : i32
    %c0_i32_0 = arith.constant 0 : i32
    %c0_i32_1 = arith.constant 0 : i32
    return %c0_i32, %c0_i32_0 : i32, i32
  }
  func.func @transform_5(%arg0: i32) -> (i32, i32) {
    %c0_i32 = arith.constant 0 : i32
    %c0_i32_0 = arith.constant 0 : i32
    %c0_i32_1 = arith.constant 0 : i32
    return %c0_i32, %c0_i32_0 : i32, i32
  }
  func.func @transform_6(%arg0: i32) -> (i32, i32) {
    %c0_i32 = arith.constant 0 : i32
    %c0_i32_0 = arith.constant 0 : i32
    %c0_i32_1 = arith.constant 0 : i32
    return %c0_i32, %c0_i32_0 : i32, i32
  }
  func.func @transform_7(%arg0: i32) -> (i32, i32) {
    %c0_i32 = arith.constant 0 : i32
    %c0_i32_0 = arith.constant 0 : i32
    return %c0_i32, %arg0 : i32, i32
  }
}

</mosaic_0001>

<llo_original>
// kernel: tpu_custom_call.1
$region0: #{tpu_custom_call.1}
  #allocation0 [shape = 'u32[]', space=smem, size = 0x4, offset = 0x4, fixed_abs, tag = 'smem constant byte address 0x4 - core index']
  #allocation1 [shape = 'u32[144,128]{1,0:T(1,128)}', space=vmem, size = 0x12000, scoped, tag = 'internal scratch']
  #allocation2 [shape = 'f32[1,1]{1,0:T(1,128)S(1)}', space=vmem, size = 0x200, scoped, tag = 'scoped memory for tpu_custom_call.1']
  %s0 = inlined_call_operand.vmem [shape: f32[8,16], index: 0, kind: input, shape index: {}]
  %s1 = inlined_call_operand.vmem [shape: bf16[32,16], index: 1, kind: input, shape index: {}]
  %s2 = inlined_call_operand.vmem [shape: f32[32,1], index: 2, kind: input, shape index: {}]
  %s3 = inlined_call_operand.vmem [shape: bf16[16,32], index: 3, kind: input, shape index: {}]
  %s4 = inlined_call_operand.vmem [shape: f32[16,1], index: 4, kind: input, shape index: {}]
  %s5 = inlined_call_operand.vmem [shape: f32[16,1], index: 5, kind: input, shape index: {}]
  %s6 = inlined_call_operand.<no memory space> [shape: f32[1,1], index: 6, kind: input, shape index: {}]
  %s7 = inlined_call_operand.hbm [shape: f32[1,8], index: 7, kind: output, shape index: {}]
  %s8 = sld [smem:[#allocation0]]
  $region38: #{tpu_custom_call.1} parent=0
    _
  %s10 = ssub.s32 1, %s8
  %s11 = scalar_select 0, %s10, %s8
  %v12 = vstv %s6
  %13 = vst [vmem:[#allocation2] sm:$0x1] %v12
  $region1: #{tpu_custom_call.1} parent=0
    #allocation3 [shape = 'u8[512]{0}', space=vmem, size = 0x400, scoped, tag = 'output window, operand 0, single buffered']
    #allocation4 [shape = 's32[1]{0}', space=sflag, size = 0x4, scoped, tag = 'scoped memory for tpu_custom_call.1']
    %14 = vsyncpa [#allocation4], 0
    // Predicated region
    $region2: #{tpu_custom_call.1} parent=1 // pred_check
      _
    $region3: #{tpu_custom_call.1} parent=1 // pred_check_branch
      %16 = sbr.rel (0) target = $region5
    $region4: #{tpu_custom_call.1} parent=1 // pred_region
      _
    $region5: #{tpu_custom_call.1} parent=1 // pred_fallthru
      _
    // Predicated region
    $region6: #{tpu_custom_call.1} parent=1 // pred_check
      _
    $region7: #{tpu_custom_call.1} parent=1 // pred_check_branch
      %18 = sbr.rel (0) target = $region9
    $region8: #{tpu_custom_call.1} parent=1 // pred_region
      _
    $region9: #{tpu_custom_call.1} parent=1 // pred_fallthru
      _
    // Predicated region
    $region10: #{tpu_custom_call.1} parent=1 // pred_check
      _
    $region11: #{tpu_custom_call.1} parent=1 // pred_check_branch
      %20 = sbr.rel (0) target = $region13
    $region12: #{tpu_custom_call.1} parent=1 // pred_region
      _
    $region13: #{tpu_custom_call.1} parent=1 // pred_fallthru
      _
    // Predicated region
    $region14: #{tpu_custom_call.1} parent=1 // pred_check
      _
    $region15: #{tpu_custom_call.1} parent=1 // pred_check_branch
      %22 = sbr.rel (0) target = $region17
    $region16: #{tpu_custom_call.1} parent=1 // pred_region
      _
    $region17: #{tpu_custom_call.1} parent=1 // pred_fallthru
      _
    // Predicated region
    $region18: #{tpu_custom_call.1} parent=1 // pred_check
      _
    $region19: #{tpu_custom_call.1} parent=1 // pred_check_branch
      %24 = sbr.rel (0) target = $region21
    $region20: #{tpu_custom_call.1} parent=1 // pred_region
      _
    $region21: #{tpu_custom_call.1} parent=1 // pred_fallthru
      _
    // Predicated region
    $region22: #{tpu_custom_call.1} parent=1 // pred_check
      _
    $region23: #{tpu_custom_call.1} parent=1 // pred_check_branch
      %26 = sbr.rel (0) target = $region25
    $region24: #{tpu_custom_call.1} parent=1 // pred_region
      _
    $region25: #{tpu_custom_call.1} parent=1 // pred_fallthru
      _
    // Predicated region
    $region26: #{tpu_custom_call.1} parent=1 // pred_check
      _
    $region27: #{tpu_custom_call.1} parent=1 // pred_check_branch
      %28 = sbr.rel (0) target = $region29
    $region28: #{tpu_custom_call.1} parent=1 // pred_region
      _
    $region29: #{tpu_custom_call.1} parent=1 // pred_fallthru
      _
    %v30 = vld [vmem:[%s0] sm:$0xff]
    %v31 = vpack.c.bf16 %v30, %v30
    %v32 = vld [vmem:[%s1] sm:$0xf]
    %v33 = vld [vmem:[%s1 + $0x4] sm:$0xf]
    %v34 = vld [vmem:[%s1 + $0x8] sm:$0xf]
    %v35 = vld [vmem:[%s1 + $0xc] sm:$0xf]
    %v36 = vld [vmem:[%s2] sm:$0xff]
    %v37 = vld [vmem:[%s2 + $0x8] sm:$0xff]
    %v38 = vld [vmem:[%s2 + $0x10] sm:$0xff]
    %v39 = vld [vmem:[%s2 + $0x18] sm:$0xff]
    %41 = vset.pattern.permute.xlu0 0
    %42 = vperm.xlu0 %41, %v36
    %v43 = vpop.permute.xlu0 %42
    %46 = vset.pattern.permute.xlu0 0
    %47 = vperm.xlu0 %46, %v37
    %v48 = vpop.permute.xlu0 %47
    %51 = vset.pattern.permute.xlu0 0
    %52 = vperm.xlu0 %51, %v38
    %v53 = vpop.permute.xlu0 %52
    %56 = vset.pattern.permute.xlu0 0
    %57 = vperm.xlu0 %56, %v39
    %v58 = vpop.permute.xlu0 %57
    %v64 = vunpack.c.l.b16 %v32
    %v65 = vunpack.c.l.b16 %v33
    %v66 = vunpack.c.l.b16 %v34
    %v67 = vunpack.c.l.b16 %v35
    %v68 = vpack.c.b16 %v65, %v64
    %v69 = vpack.c.b16 %v67, %v66
    %vm70 = vcmask 130048
    %v72 = vsel %vm70, %v68, 0
    %v75 = vsel %vm70, %v69, 0
    %v78 = vsel %vm70, %v31, 0
    %80 = vmatprep.subr.bf16.mxu0 0
    %81 = vmatpush1.bf16.xpose.msra.mxu0 0
    %82 = vmatprep.subr.bf16.mxu0 0
    %83 = vmatpush1.bf16.xpose.msra.mxu0 0
    %84 = vmatprep.subr.bf16.mxu0 0
    %85 = vmatpush1.bf16.xpose.msra.mxu0 0
    %86 = vmatprep.subr.bf16.mxu0 0
    %87 = vmatpush1.bf16.xpose.msra.mxu0 0
    %88 = vmatprep.subr.bf16.mxu0 0
    %89 = vmatpush1.bf16.xpose.msra.mxu0 0
    %90 = vmatprep.subr.bf16.mxu0 0
    %91 = vmatpush1.bf16.xpose.msra.mxu0 0
    %92 = vmatprep.subr.bf16.mxu0 0
    %93 = vmatpush1.bf16.xpose.msra.mxu0 0
    %94 = vmatprep.subr.bf16.mxu0 0
    %95 = vmatpush1.bf16.xpose.msra.mxu0 %v78
    %96 = vmatprep.subr.bf16.mxu0 0
    %97 = vmatpush2.bf16.xpose.msra.mxu0 0
    %98 = vmatprep.subr.bf16.mxu0 0
    %99 = vmatpush2.bf16.xpose.msra.mxu0 0
    %100 = vmatprep.subr.bf16.mxu0 0
    %101 = vmatpush2.bf16.xpose.msra.mxu0 0
    %102 = vmatprep.subr.bf16.mxu0 0
    %103 = vmatpush2.bf16.xpose.msra.mxu0 0
    %104 = vmatprep.subr.bf16.mxu0 0
    %105 = vmatpush2.bf16.xpose.msra.mxu0 0
    %106 = vmatprep.subr.bf16.mxu0 0
    %107 = vmatpush2.bf16.xpose.msra.mxu0 0
    %108 = vmatprep.subr.bf16.mxu0 0
    %109 = vmatpush2.bf16.xpose.msra.mxu0 0
    %110 = vmatprep.subr.bf16.mxu0 0
    %111 = vmatpush2.bf16.xpose.msra.mxu0 0
    %112 = vmatprep.mubr.bf16.mxu0 0
    %113 = vmatmul.mubr.bf16.gmra.mxu0 %v72
    %v114 = vpop.f32.mrf.mxu0
    %v115 = vadd.f32 %v43, %v114
    %v116 = vpop.f32.mrf.mxu0
    %v117 = vpop.f32.mrf.mxu0
    %v118 = vadd.f32 %v48, %v117
    %v119 = vpop.f32.mrf.mxu0
    %120 = vmatprep.mubr.bf16.mxu0 0
    %121 = vmatmul.mubr.bf16.gmra.mxu0 %v75
    %v122 = vpop.f32.mrf.mxu0
    %v123 = vadd.f32 %v53, %v122
    %v124 = vpop.f32.mrf.mxu0
    %v125 = vpop.f32.mrf.mxu0
    %v126 = vadd.f32 %v58, %v125
    %v127 = vpop.f32.mrf.mxu0
    %128 = vdwg.mxu0
    %v129 = vmax.f32 %v115, 0.0
    %v130 = vmax.f32 %v118, 0.0
    %v131 = vmax.f32 %v123, 0.0
    %v132 = vmax.f32 %v126, 0.0
    %v133 = vld [vmem:[%s3] sm:$0xf]
    %v134 = vld [vmem:[%s3 + $0x4] sm:$0xf]
    %v135 = vpack.c.bf16 %v130, %v129
    %v136 = vpack.c.bf16 %v132, %v131
    %v137 = vld [vmem:[%s4] sm:$0xff]
    %v138 = vld [vmem:[%s4 + $0x8] sm:$0xff]
    %140 = vset.pattern.permute.xlu0 0
    %141 = vperm.xlu0 %140, %v137
    %v142 = vpop.permute.xlu0 %141
    %145 = vset.pattern.permute.xlu0 0
    %146 = vperm.xlu0 %145, %v138
    %v147 = vpop.permute.xlu0 %146
    %v151 = vunpack.c.l.b16 %v133
    %v152 = vunpack.c.l.b16 %v134
    %v153 = vpack.c.b16 %v152, %v151
    %vm154 = vcmask 261120
    %v156 = vsel %vm154, %v153, 0
    %158 = vmatprep.subr.bf16.mxu0 0
    %159 = vmatpush1.bf16.msra.mxu0 0
    %160 = vmatprep.subr.bf16.mxu0 0
    %161 = vmatpush1.bf16.msra.mxu0 0
    %162 = vmatprep.subr.bf16.mxu0 0
    %163 = vmatpush1.bf16.msra.mxu0 0
    %164 = vmatprep.subr.bf16.mxu0 0
    %165 = vmatpush1.bf16.msra.mxu0 0
    %166 = vmatprep.subr.bf16.mxu0 0
    %167 = vmatpush1.bf16.msra.mxu0 0
    %168 = vmatprep.subr.bf16.mxu0 0
    %169 = vmatpush1.bf16.msra.mxu0 0
    %170 = vmatprep.subr.bf16.mxu0 0
    %171 = vmatpush1.bf16.msra.mxu0 %v136
    %172 = vmatprep.subr.bf16.mxu0 0
    %173 = vmatpush1.bf16.msra.mxu0 %v135
    %174 = vmatprep.subr.bf16.mxu0 0
    %175 = vmatpush2.bf16.msra.mxu0 0
    %176 = vmatprep.subr.bf16.mxu0 0
    %177 = vmatpush2.bf16.msra.mxu0 0
    %178 = vmatprep.subr.bf16.mxu0 0
    %179 = vmatpush2.bf16.msra.mxu0 0
    %180 = vmatprep.subr.bf16.mxu0 0
    %181 = vmatpush2.bf16.msra.mxu0 0
    %182 = vmatprep.subr.bf16.mxu0 0
    %183 = vmatpush2.bf16.msra.mxu0 0
    %184 = vmatprep.subr.bf16.mxu0 0
    %185 = vmatpush2.bf16.msra.mxu0 0
    %186 = vmatprep.subr.bf16.mxu0 0
    %187 = vmatpush2.bf16.msra.mxu0 0
    %188 = vmatprep.subr.bf16.mxu0 0
    %189 = vmatpush2.bf16.msra.mxu0 0
    %190 = vmatprep.mubr.bf16.mxu0 0
    %191 = vmatmul.mubr.bf16.gmra.mxu0 %v156
    %v192 = vpop.f32.mrf.mxu0
    %v193 = vadd.f32 %v142, %v192
    %v194 = vpop.f32.mrf.mxu0
    %v195 = vpop.f32.mrf.mxu0
    %v196 = vadd.f32 %v147, %v195
    %v197 = vpop.f32.mrf.mxu0
    %198 = vdwg.mxu0
    %v199 = vmax.f32 %v193, 0.0
    %v200 = vmax.f32 %v196, 0.0
    %v201 = vld [vmem:[%s5] sm:$0xff]
    %v202 = vld [vmem:[%s5 + $0x8] sm:$0xff]
    %v203 = vld [vmem:[#allocation2] sm:$0x1]
    %205 = vset.pattern.permute.xlu0 0
    %206 = vperm.xlu0 %205, %v201
    %v207 = vpop.permute.xlu0 %206
    %210 = vset.pattern.permute.xlu0 0
    %211 = vperm.xlu0 %210, %v202
    %v212 = vpop.permute.xlu0 %211
    %v214 = vmul.f32 %v199, %v207
    %v215 = vmul.f32 %v200, %v212
    %vm216 = vcmask 64512
    %v217 = vsel %vm216, %v214, 0.0
    %v218 = vsel %vm216, %v215, 0.0
    %v219 = vadd.f32 %v217, %v218
    %v220 = vrot.slane %v219, 4
    %v221 = vadd.f32 %v219, %v220
    %v222 = vrot.slane %v221, 2
    %v223 = vadd.f32 %v221, %v222
    %v224 = vrot.slane %v223, 1
    %v225 = vadd.f32 %v223, %v224
    %227 = vset.pattern.permute.xlu0 0
    %228 = vperm.xlu0 %227, %v203
    %v229 = vpop.permute.xlu0 %228
    %v231 = vlaneseq
    %v232 = vshrl.u32 %v231, 7
    %v233 = vsub.s32 0, %v232
    %v234 = vrot.slane %v229, %v233
    %v235 = vadd.f32 %v225, %v234
    %vm236 = vcmask 57344
    %237 = vst.msk [vmem:[#allocation3] sm:$0x1] %vm236, %v235
    // Predicated region
    $region30: #{tpu_custom_call.1} parent=1 // pred_check
      _
    $region31: #{tpu_custom_call.1} parent=1 // pred_check_branch
      %239 = sbr.rel (0) target = $region33
    $region32: #{tpu_custom_call.1} parent=1 // pred_region
      %s241 = ssub.s32 16, 16
      %242 = vsyncadd [#allocation4], %s241
      %s244 = sshll.u32 [#allocation3], 4
      %s245 = int_to_ptr.vmem [resolvable:$true] %s244
      %247 = dma.vmem_to_hbm [thread:$0]  %s245, 16, %s7, [#allocation4]
    $region33: #{tpu_custom_call.1} parent=1 // pred_fallthru
      _
    // Predicated region
    $region34: #{tpu_custom_call.1} parent=1 // pred_check
      _
    $region35: #{tpu_custom_call.1} parent=1 // pred_check_branch
      %249 = sbr.rel (0) target = $region37
    $region36: #{tpu_custom_call.1} parent=1 // pred_region
      %250 = dma.done [#allocation4], 16
    $region37: #{tpu_custom_call.1} parent=1 // pred_fallthru
      _
    %251 = vsyncpa [#allocation4], 1

</llo_original>
